<compile_context>
chip_gen: v7x
topology: tpu7x:2x2x1
jax: 0.10.0
libtpu: 0.0.40
codegen_flags: <defaults>
</compile_context>

<pallas_src>
import functools

import numpy as np

import jax
import jax.numpy as jnp
from jax import lax
from jax.experimental import pallas as pl
from jax.experimental.pallas import tpu as pltpu


def _make_dwconv_kernel(k, pad, h, w, c, cout, border):
    """Fused depthwise-conv + BN + SiLU + 1x1-conv + BN + SiLU kernel body."""
    hw = h * w
    hwp = hw + 2 * border
    use_mxu = c >= 64          # toy channel counts stay on the VPU

    def kernel(x_ref, wdw_ref, b1_ref, cmask_ref, wpw_ref, b2_ref, o_ref,
               xpad_ref):
        # x_ref:     (C, H*W)            f32  one image, channels on sublanes
        # wdw_ref:   (C, k*k)            f32  depthwise weights (BN1 scale folded)
        # b1_ref:    (C, 1)              f32  BN1 shift
        # cmask_ref: (k, H*W)            f32  column-validity mask per tap column j
        # wpw_ref:   (Cout, C)           f32  pointwise weights (BN2 scale folded)
        # b2_ref:    (Cout, 1)           f32  BN2 shift
        # o_ref:     (Cout, H*W)              output (channels-major == NCHW order)
        # xpad_ref:  (C, H*W + 2*border) f32  zero-bordered VMEM copy of the image

        # Zero-bordered copy so every shifted tap read stays in bounds and
        # out-of-image ROWS contribute exact zeros (border is 128-aligned so
        # the image store itself is an aligned lane store).
        xpad_ref[...] = jnp.zeros((c, hwp), jnp.float32)
        xpad_ref[:, border:border + hw] = x_ref[...]

        wdw = wdw_ref[...]          # (C, k*k)
        cmask = cmask_ref[...]      # (k, H*W)

        # ---- depthwise k x k conv as shift-and-add over (C, H*W) -----------
        # Output position m = r*W + q, tap (i, j) reads flat index
        # m + (i-pad)*W + (j-pad).  Row under/overflow lands in the zero
        # border; column wrap-around is killed by the per-j column mask.
        acc = jnp.zeros((c, hw), jnp.float32)
        for i in range(k):
            for j in range(k):
                t = i * k + j
                off = (i - pad) * w + (j - pad)
                tap = xpad_ref[:, border + off:border + off + hw]   # (C, H*W)
                if j != pad:                       # off-center column -> mask
                    tap = tap * cmask[j:j + 1, :]
                acc = acc + tap * wdw[:, t:t + 1]  # per-channel scalar weight

        # ---- BN1 shift + SiLU (exact sigmoid: EUP exp + f32 divide) --------
        y1 = acc + b1_ref[...]
        a1 = y1 * (1.0 / (1.0 + jnp.exp(-y1)))                       # (C, H*W)

        # ---- pointwise 1x1 conv + BN2 shift + SiLU --------------------------
        wpw = wpw_ref[...]                                           # (Cout, C)
        if use_mxu:
            # Real channel counts: (Cout, C) . (C, M) on the MXU, lane-dense out.
            y2 = lax.dot_general(
                wpw.astype(jnp.bfloat16), a1.astype(jnp.bfloat16),
                dimension_numbers=(((1,), (0,)), ((), ())),
                preferred_element_type=jnp.float32)
        else:
            # Toy channel counts: C broadcast-FMAs on the VPU beat an MXU pass.
            y2 = jnp.zeros((cout, hw), jnp.float32)
            for cc in range(c):
                y2 = y2 + wpw[:, cc:cc + 1] * a1[cc:cc + 1, :]
        y2 = y2 + b2_ref[...]
        o_ref[...] = (y2 * (1.0 / (1.0 + jnp.exp(-y2)))).astype(o_ref.dtype)

    return kernel


@functools.partial(jax.jit,
                   static_argnames=("kernel_size", "stride", "out_dtype"))
def dwconv_forward(x,
                   dw_weight, bn1_gamma, bn1_beta, bn1_mean, bn1_var,
                   pw_weight, bn2_gamma, bn2_beta, bn2_mean, bn2_var,
                   *, kernel_size, stride, eps=1e-5, out_dtype=jnp.float32):
    """DWConv forward.  x: (N, Cin, H, W) NCHW f32.  Returns (N, Cout, H, W)."""
    n, c, h, w = x.shape
    cout = pw_weight.shape[0]
    k = kernel_size
    if stride != 1:
        # TODO(synk): stride>1 needs a strided-gather tap path.
        raise NotImplementedError("only stride == 1 is implemented")
    if k % 2 != 1:
        raise NotImplementedError("only odd kernel_size is implemented")
    pad = (k - 1) // 2
    hw = h * w                      # Ho*Wo == H*W for stride 1, "same" padding

    f32 = jnp.float32
    # Free view: NCHW is already channels-on-sublanes / spatial-on-lanes.
    x_flat = x.reshape(n, c, hw).astype(f32)

    # Fold BN1 (inference running stats) into the depthwise weights.
    scale1 = (bn1_gamma / jnp.sqrt(bn1_var + eps)).astype(f32)        # (C,)
    wdw = (dw_weight[:, 0, :, :].astype(f32)
           * scale1[:, None, None]).reshape(c, k * k)                 # (C, k*k)
    b1 = (bn1_beta.astype(f32) - bn1_mean.astype(f32) * scale1).reshape(c, 1)

    # Fold BN2 into the pointwise weights.
    scale2 = (bn2_gamma / jnp.sqrt(bn2_var + eps)).astype(f32)        # (Cout,)
    wpw = pw_weight[:, :, 0, 0].astype(f32) * scale2[:, None]         # (Cout, C)
    b2 = (bn2_beta.astype(f32) - bn2_mean.astype(f32) * scale2).reshape(cout, 1)

    # Static column-validity masks: mask[j, m] = 1 iff 0 <= (m % W) + j - pad < W.
    # (Row validity is handled by the zeroed border in the kernel scratch.)
    q = np.arange(hw, dtype=np.int64) % w
    cmask = np.stack(
        [((q + (j - pad) >= 0) & (q + (j - pad) < w)).astype(np.float32)
         for j in range(k)], axis=0)                                  # (k, hw)
    cmask = jnp.asarray(cmask)

    # Lane-aligned border, large enough for the biggest tap shift pad*(W+1).
    border = ((pad * (w + 1) + 127) // 128) * 128

    kernel = _make_dwconv_kernel(k, pad, h, w, c, cout, border)

    out_itemsize = jnp.dtype(out_dtype).itemsize
    cost = pl.CostEstimate(
        flops=int(2 * n * hw * c * (k * k + cout)),
        transcendentals=int(n * hw * (c + cout)),
        bytes_accessed=int(x_flat.size * 4 + n * cout * hw * out_itemsize
                           + (wdw.size + b1.size + wpw.size + b2.size
                              + cmask.size) * 4),
    )

    out_flat = pl.pallas_call(
        kernel,
        out_shape=jax.ShapeDtypeStruct((n, cout, hw), out_dtype),
        grid=(n,),
        in_specs=[
            pl.BlockSpec((None, c, hw), lambda b: (b, 0, 0)),
            pl.BlockSpec((c, k * k), lambda b: (0, 0)),
            pl.BlockSpec((c, 1), lambda b: (0, 0)),
            pl.BlockSpec((k, hw), lambda b: (0, 0)),
            pl.BlockSpec((cout, c), lambda b: (0, 0)),
            pl.BlockSpec((cout, 1), lambda b: (0, 0)),
        ],
        out_specs=pl.BlockSpec((None, cout, hw), lambda b: (b, 0, 0)),
        scratch_shapes=[pltpu.VMEM((c, hw + 2 * border), jnp.float32)],
        compiler_params=pltpu.CompilerParams(
            dimension_semantics=("parallel",),   # batch across TCs (v7x)
        ),
        cost_estimate=cost,
    )(x_flat, wdw, b1, cmask, wpw, b2)

    # Already channels-major (NCHW); just un-flatten spatial (free view).
    return out_flat.reshape(n, cout, h, w)


def _reference(x,
               dw_weight, bn1_gamma, bn1_beta, bn1_mean, bn1_var,
               pw_weight, bn2_gamma, bn2_beta, bn2_mean, bn2_var,
               *, kernel_size, stride, eps=1e-5):
    """Pure-JAX f32 reference of the PyTorch DWConv forward (inference BN)."""
    c = x.shape[1]
    pad = (kernel_size - 1) // 2
    y = lax.conv_general_dilated(
        x.astype(jnp.float32), dw_weight.astype(jnp.float32),
        window_strides=(stride, stride),
        padding=((pad, pad), (pad, pad)),
        dimension_numbers=("NCHW", "OIHW", "NCHW"),
        feature_group_count=c,
        precision=lax.Precision.HIGHEST)
    s1 = bn1_gamma / jnp.sqrt(bn1_var + eps)
    y = y * s1[None, :, None, None] + (bn1_beta - bn1_mean * s1)[None, :, None, None]
    y = y * jax.nn.sigmoid(y)

    z = lax.conv_general_dilated(
        y, pw_weight.astype(jnp.float32),
        window_strides=(1, 1), padding=((0, 0), (0, 0)),
        dimension_numbers=("NCHW", "OIHW", "NCHW"),
        precision=lax.Precision.HIGHEST)
    s2 = bn2_gamma / jnp.sqrt(bn2_var + eps)
    z = z * s2[None, :, None, None] + (bn2_beta - bn2_mean * s2)[None, :, None, None]
    return z * jax.nn.sigmoid(z)


if __name__ == "__main__":
    # DWConv(in_channels=4, out_channels=8, kernel_size=3, stride=1)
    N, Cin, H, W = 2, 4, 16, 16
    Cout, K, STRIDE = 8, 3, 1

    key = jax.random.PRNGKey(0)
    ks = jax.random.split(key, 11)

    x = jax.random.normal(ks[0], (N, Cin, H, W), dtype=jnp.float32)
    # depthwise conv weight: (Cin, Cin/groups=1, K, K)
    dw_w = jax.random.normal(ks[1], (Cin, 1, K, K), dtype=jnp.float32) * 0.1
    bn1_g = 1.0 + 0.1 * jax.random.normal(ks[2], (Cin,), dtype=jnp.float32)
    bn1_b = 0.1 * jax.random.normal(ks[3], (Cin,), dtype=jnp.float32)
    bn1_m = 0.1 * jax.random.normal(ks[4], (Cin,), dtype=jnp.float32)
    bn1_v = jnp.abs(jax.random.normal(ks[5], (Cin,), dtype=jnp.float32)) + 0.5
    # pointwise conv weight: (Cout, Cin, 1, 1)
    pw_w = jax.random.normal(ks[6], (Cout, Cin, 1, 1), dtype=jnp.float32) * 0.1
    bn2_g = 1.0 + 0.1 * jax.random.normal(ks[7], (Cout,), dtype=jnp.float32)
    bn2_b = 0.1 * jax.random.normal(ks[8], (Cout,), dtype=jnp.float32)
    bn2_m = 0.1 * jax.random.normal(ks[9], (Cout,), dtype=jnp.float32)
    bn2_v = jnp.abs(jax.random.normal(ks[10], (Cout,), dtype=jnp.float32)) + 0.5

    out = dwconv_forward(x,
                         dw_w, bn1_g, bn1_b, bn1_m, bn1_v,
                         pw_w, bn2_g, bn2_b, bn2_m, bn2_v,
                         kernel_size=K, stride=STRIDE)
    out = jax.block_until_ready(out)

    ref = _reference(x,
                     dw_w, bn1_g, bn1_b, bn1_m, bn1_v,
                     pw_w, bn2_g, bn2_b, bn2_m, bn2_v,
                     kernel_size=K, stride=STRIDE)

    assert out.shape == (N, Cout, H, W), out.shape
    # Full f32 compute + exact sigmoid -> much tighter tolerance than before.
    assert jnp.allclose(out, ref, atol=1e-3, rtol=1e-3), \
        float(jnp.max(jnp.abs(out - ref)))

    print("KERNEL_OK")
</pallas_src>

<mosaic_0001>
module attributes {stable_mosaic.version = 11 : i64} {
  func.func @kernel(%arg0: i32, %arg1: memref<1x4x256xf32, #tpu.memory_space<vmem>>, %arg2: memref<4x9xf32, #tpu.memory_space<vmem>>, %arg3: memref<4x1xf32, #tpu.memory_space<vmem>>, %arg4: memref<3x256xf32, #tpu.memory_space<vmem>>, %arg5: memref<8x4xf32, #tpu.memory_space<vmem>>, %arg6: memref<8x1xf32, #tpu.memory_space<vmem>>, %arg7: memref<1x8x256xf32, #tpu.memory_space<vmem>>, %arg8: memref<4x512xf32, #tpu.memory_space<vmem>>) attributes {dimension_semantics = [#tpu.dimension_semantics<parallel>], iteration_bounds = array<i64: 2>, scalar_prefetch = 0 : i64, scratch_operands = 1 : i64, tpu.core_type = #tpu.core_type<tc>, window_params = [{transform_indices = @transform_0, window_bounds = array<i64: 1, 4, 256>}, {pipeline_mode = #tpu.pipeline_mode<synchronous>, transform_indices = @transform_1, window_bounds = array<i64: 4, 9>}, {pipeline_mode = #tpu.pipeline_mode<synchronous>, transform_indices = @transform_2, window_bounds = array<i64: 4, 1>}, {pipeline_mode = #tpu.pipeline_mode<synchronous>, transform_indices = @transform_3, window_bounds = array<i64: 3, 256>}, {pipeline_mode = #tpu.pipeline_mode<synchronous>, transform_indices = @transform_4, window_bounds = array<i64: 8, 4>}, {pipeline_mode = #tpu.pipeline_mode<synchronous>, transform_indices = @transform_5, window_bounds = array<i64: 8, 1>}, {transform_indices = @transform_6, window_bounds = array<i64: 1, 8, 256>}]} {
    %cst = arith.constant 0.000000e+00 : f32
    %0 = vector.broadcast %cst : f32 to vector<4x512xf32>
    %c0 = arith.constant 0 : index
    %c0_0 = arith.constant 0 : index
    %1 = vector.load %arg8[%c0, %c0_0] : memref<4x512xf32, #tpu.memory_space<vmem>>, vector<4x512xf32>
    tpu.vector_store %arg8[%c0, %c0_0], %0 {strides = array<i32>} : memref<4x512xf32, #tpu.memory_space<vmem>>, vector<4x512xf32>,
    %c0_1 = arith.constant 0 : index
    %c0_2 = arith.constant 0 : index
    %c0_3 = arith.constant 0 : index
    %2 = vector.load %arg1[%c0_1, %c0_2, %c0_3] : memref<1x4x256xf32, #tpu.memory_space<vmem>>, vector<1x4x256xf32>
    %3 = vector.shape_cast %2 : vector<1x4x256xf32> to vector<4x256xf32>
    %c0_4 = arith.constant 0 : index
    %c128 = arith.constant 128 : index
    %4 = vector.load %arg8[%c0_4, %c128] : memref<4x512xf32, #tpu.memory_space<vmem>>, vector<4x256xf32>
    tpu.vector_store %arg8[%c0_4, %c128], %3 {strides = array<i32>} : memref<4x512xf32, #tpu.memory_space<vmem>>, vector<4x256xf32>,
    %c0_5 = arith.constant 0 : index
    %c0_6 = arith.constant 0 : index
    %5 = vector.load %arg2[%c0_5, %c0_6] : memref<4x9xf32, #tpu.memory_space<vmem>>, vector<4x9xf32>
    %c0_7 = arith.constant 0 : index
    %c0_8 = arith.constant 0 : index
    %6 = vector.load %arg4[%c0_7, %c0_8] : memref<3x256xf32, #tpu.memory_space<vmem>>, vector<3x256xf32>
    %cst_9 = arith.constant 0.000000e+00 : f32
    %7 = vector.broadcast %cst_9 : f32 to vector<4x256xf32>
    %c0_10 = arith.constant 0 : index
    %c111 = arith.constant 111 : index
    %8 = vector.load %arg8[%c0_10, %c111] : memref<4x512xf32, #tpu.memory_space<vmem>>, vector<4x256xf32>
    %9 = vector.extract_strided_slice %6 {offsets = [0, 0], sizes = [1, 256], strides = [1, 1]} : vector<3x256xf32> to vector<1x256xf32>
    %10 = vector.broadcast %9 : vector<1x256xf32> to vector<4x256xf32>
    %11 = arith.mulf %8, %10 : vector<4x256xf32>
    %12 = vector.extract_strided_slice %5 {offsets = [0, 0], sizes = [4, 1], strides = [1, 1]} : vector<4x9xf32> to vector<4x1xf32>
    %13 = vector.broadcast %12 : vector<4x1xf32> to vector<4x256xf32>
    %14 = arith.mulf %11, %13 : vector<4x256xf32>
    %15 = arith.addf %7, %14 : vector<4x256xf32>
    %c0_11 = arith.constant 0 : index
    %c112 = arith.constant 112 : index
    %16 = vector.load %arg8[%c0_11, %c112] : memref<4x512xf32, #tpu.memory_space<vmem>>, vector<4x256xf32>
    %17 = vector.extract_strided_slice %5 {offsets = [0, 1], sizes = [4, 1], strides = [1, 1]} : vector<4x9xf32> to vector<4x1xf32>
    %18 = vector.broadcast %17 : vector<4x1xf32> to vector<4x256xf32>
    %19 = arith.mulf %16, %18 : vector<4x256xf32>
    %20 = arith.addf %15, %19 : vector<4x256xf32>
    %c0_12 = arith.constant 0 : index
    %c113 = arith.constant 113 : index
    %21 = vector.load %arg8[%c0_12, %c113] : memref<4x512xf32, #tpu.memory_space<vmem>>, vector<4x256xf32>
    %22 = vector.extract_strided_slice %6 {offsets = [2, 0], sizes = [1, 256], strides = [1, 1]} : vector<3x256xf32> to vector<1x256xf32>
    %23 = vector.broadcast %22 : vector<1x256xf32> to vector<4x256xf32>
    %24 = arith.mulf %21, %23 : vector<4x256xf32>
    %25 = vector.extract_strided_slice %5 {offsets = [0, 2], sizes = [4, 1], strides = [1, 1]} : vector<4x9xf32> to vector<4x1xf32>
    %26 = vector.broadcast %25 : vector<4x1xf32> to vector<4x256xf32>
    %27 = arith.mulf %24, %26 : vector<4x256xf32>
    %28 = arith.addf %20, %27 : vector<4x256xf32>
    %c0_13 = arith.constant 0 : index
    %c127 = arith.constant 127 : index
    %29 = vector.load %arg8[%c0_13, %c127] : memref<4x512xf32, #tpu.memory_space<vmem>>, vector<4x256xf32>
    %30 = vector.extract_strided_slice %6 {offsets = [0, 0], sizes = [1, 256], strides = [1, 1]} : vector<3x256xf32> to vector<1x256xf32>
    %31 = vector.broadcast %30 : vector<1x256xf32> to vector<4x256xf32>
    %32 = arith.mulf %29, %31 : vector<4x256xf32>
    %33 = vector.extract_strided_slice %5 {offsets = [0, 3], sizes = [4, 1], strides = [1, 1]} : vector<4x9xf32> to vector<4x1xf32>
    %34 = vector.broadcast %33 : vector<4x1xf32> to vector<4x256xf32>
    %35 = arith.mulf %32, %34 : vector<4x256xf32>
    %36 = arith.addf %28, %35 : vector<4x256xf32>
    %c0_14 = arith.constant 0 : index
    %c128_15 = arith.constant 128 : index
    %37 = vector.load %arg8[%c0_14, %c128_15] : memref<4x512xf32, #tpu.memory_space<vmem>>, vector<4x256xf32>
    %38 = vector.extract_strided_slice %5 {offsets = [0, 4], sizes = [4, 1], strides = [1, 1]} : vector<4x9xf32> to vector<4x1xf32>
    %39 = vector.broadcast %38 : vector<4x1xf32> to vector<4x256xf32>
    %40 = arith.mulf %37, %39 : vector<4x256xf32>
    %41 = arith.addf %36, %40 : vector<4x256xf32>
    %c0_16 = arith.constant 0 : index
    %c129 = arith.constant 129 : index
    %42 = vector.load %arg8[%c0_16, %c129] : memref<4x512xf32, #tpu.memory_space<vmem>>, vector<4x256xf32>
    %43 = vector.extract_strided_slice %6 {offsets = [2, 0], sizes = [1, 256], strides = [1, 1]} : vector<3x256xf32> to vector<1x256xf32>
    %44 = vector.broadcast %43 : vector<1x256xf32> to vector<4x256xf32>
    %45 = arith.mulf %42, %44 : vector<4x256xf32>
    %46 = vector.extract_strided_slice %5 {offsets = [0, 5], sizes = [4, 1], strides = [1, 1]} : vector<4x9xf32> to vector<4x1xf32>
    %47 = vector.broadcast %46 : vector<4x1xf32> to vector<4x256xf32>
    %48 = arith.mulf %45, %47 : vector<4x256xf32>
    %49 = arith.addf %41, %48 : vector<4x256xf32>
    %c0_17 = arith.constant 0 : index
    %c143 = arith.constant 143 : index
    %50 = vector.load %arg8[%c0_17, %c143] : memref<4x512xf32, #tpu.memory_space<vmem>>, vector<4x256xf32>
    %51 = vector.extract_strided_slice %6 {offsets = [0, 0], sizes = [1, 256], strides = [1, 1]} : vector<3x256xf32> to vector<1x256xf32>
    %52 = vector.broadcast %51 : vector<1x256xf32> to vector<4x256xf32>
    %53 = arith.mulf %50, %52 : vector<4x256xf32>
    %54 = vector.extract_strided_slice %5 {offsets = [0, 6], sizes = [4, 1], strides = [1, 1]} : vector<4x9xf32> to vector<4x1xf32>
    %55 = vector.broadcast %54 : vector<4x1xf32> to vector<4x256xf32>
    %56 = arith.mulf %53, %55 : vector<4x256xf32>
    %57 = arith.addf %49, %56 : vector<4x256xf32>
    %c0_18 = arith.constant 0 : index
    %c144 = arith.constant 144 : index
    %58 = vector.load %arg8[%c0_18, %c144] : memref<4x512xf32, #tpu.memory_space<vmem>>, vector<4x256xf32>
    %59 = vector.extract_strided_slice %5 {offsets = [0, 7], sizes = [4, 1], strides = [1, 1]} : vector<4x9xf32> to vector<4x1xf32>
    %60 = vector.broadcast %59 : vector<4x1xf32> to vector<4x256xf32>
    %61 = arith.mulf %58, %60 : vector<4x256xf32>
    %62 = arith.addf %57, %61 : vector<4x256xf32>
    %c0_19 = arith.constant 0 : index
    %c145 = arith.constant 145 : index
    %63 = vector.load %arg8[%c0_19, %c145] : memref<4x512xf32, #tpu.memory_space<vmem>>, vector<4x256xf32>
    %64 = vector.extract_strided_slice %6 {offsets = [2, 0], sizes = [1, 256], strides = [1, 1]} : vector<3x256xf32> to vector<1x256xf32>
    %65 = vector.broadcast %64 : vector<1x256xf32> to vector<4x256xf32>
    %66 = arith.mulf %63, %65 : vector<4x256xf32>
    %67 = vector.extract_strided_slice %5 {offsets = [0, 8], sizes = [4, 1], strides = [1, 1]} : vector<4x9xf32> to vector<4x1xf32>
    %68 = vector.broadcast %67 : vector<4x1xf32> to vector<4x256xf32>
    %69 = arith.mulf %66, %68 : vector<4x256xf32>
    %70 = arith.addf %62, %69 : vector<4x256xf32>
    %c0_20 = arith.constant 0 : index
    %c0_21 = arith.constant 0 : index
    %71 = vector.load %arg3[%c0_20, %c0_21] : memref<4x1xf32, #tpu.memory_space<vmem>>, vector<4x1xf32>
    %72 = vector.broadcast %71 : vector<4x1xf32> to vector<4x256xf32>
    %73 = arith.addf %70, %72 : vector<4x256xf32>
    %cst_22 = arith.constant 0.000000e+00 : f32
    %74 = vector.broadcast %cst_22 : f32 to vector<4x256xf32>
    %75 = arith.subf %74, %73 : vector<4x256xf32>
    %76 = math.exp %75 : vector<4x256xf32>
    %cst_23 = arith.constant 1.000000e+00 : f32
    %77 = vector.broadcast %cst_23 : f32 to vector<4x256xf32>
    %78 = arith.addf %77, %76 : vector<4x256xf32>
    %cst_24 = arith.constant 1.000000e+00 : f32
    %79 = vector.broadcast %cst_24 : f32 to vector<4x256xf32>
    %80 = arith.divf %79, %78 : vector<4x256xf32>
    %81 = arith.mulf %73, %80 : vector<4x256xf32>
    %c0_25 = arith.constant 0 : index
    %c0_26 = arith.constant 0 : index
    %82 = vector.load %arg5[%c0_25, %c0_26] : memref<8x4xf32, #tpu.memory_space<vmem>>, vector<8x4xf32>
    %cst_27 = arith.constant 0.000000e+00 : f32
    %83 = vector.broadcast %cst_27 : f32 to vector<8x256xf32>
    %84 = vector.extract_strided_slice %82 {offsets = [0, 0], sizes = [8, 1], strides = [1, 1]} : vector<8x4xf32> to vector<8x1xf32>
    %85 = vector.extract_strided_slice %81 {offsets = [0, 0], sizes = [1, 256], strides = [1, 1]} : vector<4x256xf32> to vector<1x256xf32>
    %86 = vector.broadcast %84 : vector<8x1xf32> to vector<8x256xf32>
    %87 = vector.broadcast %85 : vector<1x256xf32> to vector<8x256xf32>
    %88 = arith.mulf %86, %87 : vector<8x256xf32>
    %89 = arith.addf %83, %88 : vector<8x256xf32>
    %90 = vector.extract_strided_slice %82 {offsets = [0, 1], sizes = [8, 1], strides = [1, 1]} : vector<8x4xf32> to vector<8x1xf32>
    %91 = vector.extract_strided_slice %81 {offsets = [1, 0], sizes = [1, 256], strides = [1, 1]} : vector<4x256xf32> to vector<1x256xf32>
    %92 = vector.broadcast %90 : vector<8x1xf32> to vector<8x256xf32>
    %93 = vector.broadcast %91 : vector<1x256xf32> to vector<8x256xf32>
    %94 = arith.mulf %92, %93 : vector<8x256xf32>
    %95 = arith.addf %89, %94 : vector<8x256xf32>
    %96 = vector.extract_strided_slice %82 {offsets = [0, 2], sizes = [8, 1], strides = [1, 1]} : vector<8x4xf32> to vector<8x1xf32>
    %97 = vector.extract_strided_slice %81 {offsets = [2, 0], sizes = [1, 256], strides = [1, 1]} : vector<4x256xf32> to vector<1x256xf32>
    %98 = vector.broadcast %96 : vector<8x1xf32> to vector<8x256xf32>
    %99 = vector.broadcast %97 : vector<1x256xf32> to vector<8x256xf32>
    %100 = arith.mulf %98, %99 : vector<8x256xf32>
    %101 = arith.addf %95, %100 : vector<8x256xf32>
    %102 = vector.extract_strided_slice %82 {offsets = [0, 3], sizes = [8, 1], strides = [1, 1]} : vector<8x4xf32> to vector<8x1xf32>
    %103 = vector.extract_strided_slice %81 {offsets = [3, 0], sizes = [1, 256], strides = [1, 1]} : vector<4x256xf32> to vector<1x256xf32>
    %104 = vector.broadcast %102 : vector<8x1xf32> to vector<8x256xf32>
    %105 = vector.broadcast %103 : vector<1x256xf32> to vector<8x256xf32>
    %106 = arith.mulf %104, %105 : vector<8x256xf32>
    %107 = arith.addf %101, %106 : vector<8x256xf32>
    %c0_28 = arith.constant 0 : index
    %c0_29 = arith.constant 0 : index
    %108 = vector.load %arg6[%c0_28, %c0_29] : memref<8x1xf32, #tpu.memory_space<vmem>>, vector<8x1xf32>
    %109 = vector.broadcast %108 : vector<8x1xf32> to vector<8x256xf32>
    %110 = arith.addf %107, %109 : vector<8x256xf32>
    %cst_30 = arith.constant 0.000000e+00 : f32
    %111 = vector.broadcast %cst_30 : f32 to vector<8x256xf32>
    %112 = arith.subf %111, %110 : vector<8x256xf32>
    %113 = math.exp %112 : vector<8x256xf32>
    %cst_31 = arith.constant 1.000000e+00 : f32
    %114 = vector.broadcast %cst_31 : f32 to vector<8x256xf32>
    %115 = arith.addf %114, %113 : vector<8x256xf32>
    %cst_32 = arith.constant 1.000000e+00 : f32
    %116 = vector.broadcast %cst_32 : f32 to vector<8x256xf32>
    %117 = arith.divf %116, %115 : vector<8x256xf32>
    %118 = arith.mulf %110, %117 : vector<8x256xf32>
    %c0_33 = arith.constant 0 : index
    %c0_34 = arith.constant 0 : index
    %c0_35 = arith.constant 0 : index
    %119 = vector.load %arg7[%c0_33, %c0_34, %c0_35] : memref<1x8x256xf32, #tpu.memory_space<vmem>>, vector<1x8x256xf32>
    %120 = vector.shape_cast %119 : vector<1x8x256xf32> to vector<8x256xf32>
    %121 = vector.shape_cast %118 : vector<8x256xf32> to vector<1x8x256xf32>
    tpu.vector_store %arg7[%c0_33, %c0_34, %c0_35], %121 {strides = array<i32>} : memref<1x8x256xf32, #tpu.memory_space<vmem>>, vector<1x8x256xf32>,
    return
  }
  func.func @transform_0(%arg0: i32) -> (i32, i32, i32) {
    %c0_i32 = arith.constant 0 : i32
    %c0_i32_0 = arith.constant 0 : i32
    %c0_i32_1 = arith.constant 0 : i32
    return %arg0, %c0_i32, %c0_i32_0 : i32, i32, i32
  }
  func.func @transform_1(%arg0: i32) -> (i32, i32) {
    %c0_i32 = arith.constant 0 : i32
    %c0_i32_0 = arith.constant 0 : i32
    %c0_i32_1 = arith.constant 0 : i32
    return %c0_i32, %c0_i32_0 : i32, i32
  }
  func.func @transform_2(%arg0: i32) -> (i32, i32) {
    %c0_i32 = arith.constant 0 : i32
    %c0_i32_0 = arith.constant 0 : i32
    %c0_i32_1 = arith.constant 0 : i32
    return %c0_i32, %c0_i32_0 : i32, i32
  }
  func.func @transform_3(%arg0: i32) -> (i32, i32) {
    %c0_i32 = arith.constant 0 : i32
    %c0_i32_0 = arith.constant 0 : i32
    %c0_i32_1 = arith.constant 0 : i32
    return %c0_i32, %c0_i32_0 : i32, i32
  }
  func.func @transform_4(%arg0: i32) -> (i32, i32) {
    %c0_i32 = arith.constant 0 : i32
    %c0_i32_0 = arith.constant 0 : i32
    %c0_i32_1 = arith.constant 0 : i32
    return %c0_i32, %c0_i32_0 : i32, i32
  }
  func.func @transform_5(%arg0: i32) -> (i32, i32) {
    %c0_i32 = arith.constant 0 : i32
    %c0_i32_0 = arith.constant 0 : i32
    %c0_i32_1 = arith.constant 0 : i32
    return %c0_i32, %c0_i32_0 : i32, i32
  }
  func.func @transform_6(%arg0: i32) -> (i32, i32, i32) {
    %c0_i32 = arith.constant 0 : i32
    %c0_i32_0 = arith.constant 0 : i32
    %c0_i32_1 = arith.constant 0 : i32
    return %arg0, %c0_i32, %c0_i32_0 : i32, i32, i32
  }
}

</mosaic_0001>

<llo_original>
// kernel: dwconv_forward.1
$region0: #{dwconv_forward.1}
  #allocation0 [shape = 'u32[]', space=smem, size = 0x4, offset = 0x4, fixed_abs, tag = 'smem constant byte address 0x4 - core index']
  #allocation1 [shape = 'u32[144,128]{1,0:T(1,128)}', space=vmem, size = 0x12000, scoped, tag = 'internal scratch']
  #allocation2 [shape = 'f32[4,512]{1,0:T(4,128)}', space=vmem, size = 0x2000, scoped, tag = 'scratch operand']
  %s0 = inlined_call_operand.vmem [shape: f32[2,4,256], index: 0, kind: input, shape index: {}]
  %s1 = inlined_call_operand.vmem [shape: f32[4,9], index: 1, kind: input, shape index: {}]
  %s2 = inlined_call_operand.vmem [shape: f32[4,1], index: 2, kind: input, shape index: {}]
  %s3 = inlined_call_operand.vmem [shape: f32[3,256], index: 3, kind: input, shape index: {}]
  %s4 = inlined_call_operand.vmem [shape: f32[8,4], index: 4, kind: input, shape index: {}]
  %s5 = inlined_call_operand.vmem [shape: f32[8,1], index: 5, kind: input, shape index: {}]
  %s6 = inlined_call_operand.vmem [shape: f32[2,8,256], index: 6, kind: output, shape index: {}]
  %s7 = sld [smem:[#allocation0]]
  $region57: #{dwconv_forward.1} parent=0
    _
  %s9 = ssub.s32 1, %s7
  %s10 = scalar_select 0, %s9, %s7
  loop: start=0, step=1, limit=4
  $region2: #{dwconv_forward.1} parent=0 // loop_pre_header
    _
  $region3: #{dwconv_forward.1} parent=0 // loop_header
    %s12 = sphi 0, %s16
    %p13 = scmp.ge.s32.totalorder %s12, 4
    %s22 = sphi 0, %s24
    %s25 = sphi 0, %s22
    %s26 = sphi 0, %s25
    %s42 = sphi 0, %s26
    %s46 = sphi 0, %s46
    %s48 = sphi 0, %s46
    %s49 = sphi 0, %s48
    %s63 = sphi 0, %s49
    %s67 = sphi 0, %s67
    %s69 = sphi 0, %s67
    %s70 = sphi 0, %s69
    %s84 = sphi 0, %s70
    %s88 = sphi 0, %s88
    %s90 = sphi 0, %s88
    %s91 = sphi 0, %s90
    %s105 = sphi 0, %s91
    %s109 = sphi 0, %s109
    %s111 = sphi 0, %s109
    %s112 = sphi 0, %s111
    %s126 = sphi 0, %s112
    %s130 = sphi 0, %s130
    %s132 = sphi 0, %s130
    %s133 = sphi 0, %s132
    %s147 = sphi 0, %s133
    %s153 = sphi 0, %s155
    %s156 = sphi 0, %s153
    %s157 = sphi 0, %s156
    %s173 = sphi 0, %s157
  $region4: #{dwconv_forward.1} parent=0 // loop_header_branch
    %15 = sbr.rel (%p13) target = $region8
  $region5: #{dwconv_forward.1} parent=0 // loop_body
    %s17 = ssub.s32 %s12, 1
    %s18 = ssub.s32 %s12, 2
    %s19 = sadd.s32 %s12, 1
    %s20 = ssub.s32 %s12, %s19
    %p21 = scmp.eq.s32.totalorder %s20, 0
    %s23 = sadd.s32 %s22, 1
    %s24 = scalar_select %p21, %s22, %s23
    %p27 = pneg %p21
    %p28 = scmp.eq.s32.totalorder %s12, 1
    %p29 = por %p27, %p28
    %p30 = scmp.ne.s32.totalorder %s22, %s25
    %p31 = scmp.eq.s32.totalorder %s12, 0
    %p32 = por %p30, %p31
    %p33 = scmp.ne.s32.totalorder %s22, %s25
    %p34 = scmp.eq.s32.totalorder %s17, 1
    %p35 = por %p33, %p34
    %p36 = scmp.ne.s32.totalorder %s25, %s26
    %p37 = scmp.eq.s32.totalorder %s17, 0
    %p38 = por %p36, %p37
    %p39 = scmp.ne.s32.totalorder %s25, %s26
    %p40 = scmp.eq.s32.totalorder %s18, 1
    %p41 = por %p39, %p40
    %p43 = scmp.ne.s32.totalorder %s26, %s42
    %p44 = scmp.eq.s32.totalorder %s18, 0
    %p45 = por %p43, %p44
    %s47 = sadd.s32 %s46, 1
    %p50 = scmp.eq.s32.totalorder %s12, 1
    %p51 = scmp.ne.s32.totalorder %s46, %s48
    %p52 = scmp.eq.s32.totalorder %s12, 0
    %p53 = por %p51, %p52
    %p54 = scmp.ne.s32.totalorder %s46, %s48
    %p55 = scmp.eq.s32.totalorder %s17, 1
    %p56 = por %p54, %p55
    %p57 = scmp.ne.s32.totalorder %s48, %s49
    %p58 = scmp.eq.s32.totalorder %s17, 0
    %p59 = por %p57, %p58
    %p60 = scmp.ne.s32.totalorder %s48, %s49
    %p61 = scmp.eq.s32.totalorder %s18, 1
    %p62 = por %p60, %p61
    %p64 = scmp.ne.s32.totalorder %s49, %s63
    %p65 = scmp.eq.s32.totalorder %s18, 0
    %p66 = por %p64, %p65
    %s68 = sadd.s32 %s67, 1
    %p71 = scmp.eq.s32.totalorder %s12, 1
    %p72 = scmp.ne.s32.totalorder %s67, %s69
    %p73 = scmp.eq.s32.totalorder %s12, 0
    %p74 = por %p72, %p73
    %p75 = scmp.ne.s32.totalorder %s67, %s69
    %p76 = scmp.eq.s32.totalorder %s17, 1
    %p77 = por %p75, %p76
    %p78 = scmp.ne.s32.totalorder %s69, %s70
    %p79 = scmp.eq.s32.totalorder %s17, 0
    %p80 = por %p78, %p79
    %p81 = scmp.ne.s32.totalorder %s69, %s70
    %p82 = scmp.eq.s32.totalorder %s18, 1
    %p83 = por %p81, %p82
    %p85 = scmp.ne.s32.totalorder %s70, %s84
    %p86 = scmp.eq.s32.totalorder %s18, 0
    %p87 = por %p85, %p86
    %s89 = sadd.s32 %s88, 1
    %p92 = scmp.eq.s32.totalorder %s12, 1
    %p93 = scmp.ne.s32.totalorder %s88, %s90
    %p94 = scmp.eq.s32.totalorder %s12, 0
    %p95 = por %p93, %p94
    %p96 = scmp.ne.s32.totalorder %s88, %s90
    %p97 = scmp.eq.s32.totalorder %s17, 1
    %p98 = por %p96, %p97
    %p99 = scmp.ne.s32.totalorder %s90, %s91
    %p100 = scmp.eq.s32.totalorder %s17, 0
    %p101 = por %p99, %p100
    %p102 = scmp.ne.s32.totalorder %s90, %s91
    %p103 = scmp.eq.s32.totalorder %s18, 1
    %p104 = por %p102, %p103
    %p106 = scmp.ne.s32.totalorder %s91, %s105
    %p107 = scmp.eq.s32.totalorder %s18, 0
    %p108 = por %p106, %p107
    %s110 = sadd.s32 %s109, 1
    %p113 = scmp.eq.s32.totalorder %s12, 1
    %p114 = scmp.ne.s32.totalorder %s109, %s111
    %p115 = scmp.eq.s32.totalorder %s12, 0
    %p116 = por %p114, %p115
    %p117 = scmp.ne.s32.totalorder %s109, %s111
    %p118 = scmp.eq.s32.totalorder %s17, 1
    %p119 = por %p117, %p118
    %p120 = scmp.ne.s32.totalorder %s111, %s112
    %p121 = scmp.eq.s32.totalorder %s17, 0
    %p122 = por %p120, %p121
    %p123 = scmp.ne.s32.totalorder %s111, %s112
    %p124 = scmp.eq.s32.totalorder %s18, 1
    %p125 = por %p123, %p124
    %p127 = scmp.ne.s32.totalorder %s112, %s126
    %p128 = scmp.eq.s32.totalorder %s18, 0
    %p129 = por %p127, %p128
    %s131 = sadd.s32 %s130, 1
    %p134 = scmp.eq.s32.totalorder %s12, 1
    %p135 = scmp.ne.s32.totalorder %s130, %s132
    %p136 = scmp.eq.s32.totalorder %s12, 0
    %p137 = por %p135, %p136
    %p138 = scmp.ne.s32.totalorder %s130, %s132
    %p139 = scmp.eq.s32.totalorder %s17, 1
    %p140 = por %p138, %p139
    %p141 = scmp.ne.s32.totalorder %s132, %s133
    %p142 = scmp.eq.s32.totalorder %s17, 0
    %p143 = por %p141, %p142
    %p144 = scmp.ne.s32.totalorder %s132, %s133
    %p145 = scmp.eq.s32.totalorder %s18, 1
    %p146 = por %p144, %p145
    %p148 = scmp.ne.s32.totalorder %s133, %s147
    %p149 = scmp.eq.s32.totalorder %s18, 0
    %p150 = por %p148, %p149
    %s151 = ssub.s32 %s12, %s19
    %p152 = scmp.eq.s32.totalorder %s151, 0
    %s154 = sadd.s32 %s153, 1
    %s155 = scalar_select %p152, %s153, %s154
    %p158 = pneg %p152
    %p159 = scmp.eq.s32.totalorder %s12, 1
    %p160 = por %p158, %p159
    %p161 = scmp.ne.s32.totalorder %s153, %s156
    %p162 = scmp.eq.s32.totalorder %s12, 0
    %p163 = por %p161, %p162
    %p164 = scmp.ne.s32.totalorder %s153, %s156
    %p165 = scmp.eq.s32.totalorder %s17, 1
    %p166 = por %p164, %p165
    %p167 = scmp.ne.s32.totalorder %s156, %s157
    %p168 = scmp.eq.s32.totalorder %s17, 0
    %p169 = por %p167, %p168
    %p170 = scmp.ne.s32.totalorder %s156, %s157
    %p171 = scmp.eq.s32.totalorder %s18, 1
    %p172 = por %p170, %p171
    %p174 = scmp.ne.s32.totalorder %s157, %s173
    %p175 = scmp.eq.s32.totalorder %s18, 0
    %p176 = por %p174, %p175
    %p177 = scmp.le.s32.totalorder 1, %s12
    %p178 = scmp.lt.s32.totalorder %s12, 3
    %p179 = pnand %p177, %p178
    %p180 = pneg %p179
    // Predicated region
    $region9: #{dwconv_forward.1} parent=5 // pred_check
      _
    $region10: #{dwconv_forward.1} parent=5 // pred_check_branch
      %182 = sbr.rel (%p179) target = $region12
    $region11: #{dwconv_forward.1} parent=5 // pred_region
      %s183 = ssub.s32 %s12, 1
      // Predicated region
      $region13: #{dwconv_forward.1} parent=11 // pred_check
        %p184 = pneg %p59
      $region14: #{dwconv_forward.1} parent=11 // pred_check_branch
        %186 = sbr.rel (%p184) target = $region16
      $region15: #{dwconv_forward.1} parent=11 // pred_region
        _
      $region16: #{dwconv_forward.1} parent=11 // pred_fallthru
        _
      // Predicated region
      $region17: #{dwconv_forward.1} parent=11 // pred_check
        %p187 = pneg %p80
      $region18: #{dwconv_forward.1} parent=11 // pred_check_branch
        %189 = sbr.rel (%p187) target = $region20
      $region19: #{dwconv_forward.1} parent=11 // pred_region
        _
      $region20: #{dwconv_forward.1} parent=11 // pred_fallthru
        _
      // Predicated region
      $region21: #{dwconv_forward.1} parent=11 // pred_check
        %p190 = pneg %p101
      $region22: #{dwconv_forward.1} parent=11 // pred_check_branch
        %192 = sbr.rel (%p190) target = $region24
      $region23: #{dwconv_forward.1} parent=11 // pred_region
        _
      $region24: #{dwconv_forward.1} parent=11 // pred_fallthru
        _
      // Predicated region
      $region25: #{dwconv_forward.1} parent=11 // pred_check
        %p193 = pneg %p122
      $region26: #{dwconv_forward.1} parent=11 // pred_check_branch
        %195 = sbr.rel (%p193) target = $region28
      $region27: #{dwconv_forward.1} parent=11 // pred_region
        _
      $region28: #{dwconv_forward.1} parent=11 // pred_fallthru
        _
      // Predicated region
      $region29: #{dwconv_forward.1} parent=11 // pred_check
        %p196 = pneg %p143
      $region30: #{dwconv_forward.1} parent=11 // pred_check_branch
        %198 = sbr.rel (%p196) target = $region32
      $region31: #{dwconv_forward.1} parent=11 // pred_region
        _
      $region32: #{dwconv_forward.1} parent=11 // pred_fallthru
        _
    $region12: #{dwconv_forward.1} parent=5 // pred_fallthru
      _
    %p199 = scmp.lt.s32.totalorder %s12, 2
    // Predicated region
    $region33: #{dwconv_forward.1} parent=5 // pred_check
      %p200 = pneg %p199
    $region34: #{dwconv_forward.1} parent=5 // pred_check_branch
      %202 = sbr.rel (%p200) target = $region36
    $region35: #{dwconv_forward.1} parent=5 // pred_region
      // Predicated region
      $region37: #{dwconv_forward.1} parent=35 // pred_check
        %p203 = pneg %p32
      $region38: #{dwconv_forward.1} parent=35 // pred_check_branch
        %205 = sbr.rel (%p203) target = $region40
      $region39: #{dwconv_forward.1} parent=35 // pred_region
        %p206 = scmp.lt.s32.totalorder %s12, 1
        %s207 = scalar_select %p206, %s12, 1
        %s208 = smul.addr %s207, 2
        %s209 = smul.addr %s208, 4
        %s210 = scalar_lea.vmem %s0, %s209
      $region40: #{dwconv_forward.1} parent=35 // pred_fallthru
        _
    $region36: #{dwconv_forward.1} parent=5 // pred_fallthru
      _
    %p211 = scmp.le.s32.totalorder 1, %s12
    %p212 = scmp.lt.s32.totalorder %s12, 3
    %p213 = pnand %p211, %p212
    %p214 = pneg %p213
    // Predicated region
    $region41: #{dwconv_forward.1} parent=5 // pred_check
      _
    $region42: #{dwconv_forward.1} parent=5 // pred_check_branch
      %216 = sbr.rel (%p213) target = $region44
    $region43: #{dwconv_forward.1} parent=5 // pred_region
      %s217 = ssub.s32 %s12, 1
      %p218 = scmp.lt.s32.totalorder %s17, 1
      %s219 = scalar_select %p218, %s17, 1
      %s220 = smul.addr %s219, 2
      %s221 = smul.addr %s220, 4
      %s222 = scalar_lea.vmem %s0, %s221
      %p223 = pneg %p38
      %p224 = pneg %p35
      %p225 = pneg %p59
      %p226 = pneg %p56
      %p227 = pneg %p80
      %p228 = pneg %p77
      %p229 = pneg %p101
      %p230 = pneg %p98
      %p231 = pneg %p122
      %p232 = pneg %p119
      %p233 = pneg %p143
      %p234 = pneg %p140
      %p235 = pneg %p169
      %p236 = pneg %p166
      %p237 = scmp.lt.s32.totalorder %s17, 1
      %s238 = scalar_select %p237, %s17, 1
      %s239 = smul.addr %s238, 2
      %s240 = smul.addr %s239, 8
      %s241 = scalar_lea.vmem %s6, %s240
      %p242 = scmp.lt.s32.totalorder %s17, 1
      %s243 = scalar_select %p242, %s17, 1
      %s244 = smul.addr %s243, 2
      %s245 = smul.addr %s244, 4
      %s246 = scalar_lea.vmem %s0, %s245
      %p247 = scmp.lt.s32.totalorder %s17, 1
      %s248 = scalar_select %p247, %s17, 1
      %s249 = smul.addr %s248, 2
      %s250 = smul.addr %s249, 8
      %s251 = scalar_lea.vmem %s6, %s250
      %252 = vst [vmem:[#allocation2] sm:$0xff] 0.0
      %253 = vst [vmem:[#allocation2 + $0x8] sm:$0xff] 0.0
      %v254 = vld [vmem:[%s246] sm:$0xff]
      %255 = vst [vmem:[#allocation2 + $0x4] sm:$0xff] %v254
      %v256 = vld [vmem:[%s1] sm:$0xf]
      %v257 = vld [vmem:[%s3] sm:$0x77]
      %v258 = vld [vmem:[#allocation2] sm:$0xff]
      %v259 = vld [vmem:[#allocation2 + $0x8] sm:$0xf]
      %v261 = vlaneseq
      %v262 = vshrl.u32 %v261, 7
      %v263 = vsub.s32 0, %v262
      %v264 = vrot.slane %v257, %v263
      %v265 = vlaneseq
      %v266 = vshrl.u32 %v265, 7
      %v267 = vsub.s32 4, %v266
      %v268 = vrot.slane %v257, %v267
      %v271 = vlaneseq
      %v272 = vshrl.u32 %v271, 7
      %v273 = vsub.s32 0, %v272
      %v274 = vrot.slane %v264, %v273
      %v275 = vlaneseq
      %v276 = vshrl.u32 %v275, 7
      %v277 = vsub.s32 0, %v276
      %v278 = vrot.slane %v268, %v277
      %v281 = vcombine.low %v274, %v278
      %282 = vrot.lane.b32.xlu0 %v281, 111
      %v283 = vpop.permute.xlu0 %282
      %v284 = vrot.slane %v283, 4
      %vm285 = vcmask 908288
      %v286 = vsel %vm285, %v284, %v283
      %v289 = vmul.f32 %v258, %v286
      %v290 = vmul.f32 %v259, %v284
      %292 = vset.pattern.permute.xlu0 0
      %293 = vperm.xlu0 %292, %v256
      %v294 = vpop.permute.xlu0 %293
      %v296 = vunpack.c.l.s4 839922192
      %v297 = vunpack.c.0.s8 %v296
      %v298 = vlaneseq
      %v299 = vshrl.u32 %v298, 7
      %v300 = vsub.s32 %v297, %v299
      %v301 = vrot.slane %v294, %v300
      %v303 = vmul.f32 %v289, %v301
      %v304 = vmul.f32 %v290, %v301
      %v305 = vadd.f32 %v303, 0.0
      %v306 = vadd.f32 %v304, 0.0
      %v307 = vld [vmem:[#allocation2] sm:$0xff]
      %v308 = vld [vmem:[#allocation2 + $0x8] sm:$0xf]
      %309 = vset.pattern.permute.xlu0 1
      %310 = vperm.xlu0 %309, %v256
      %v311 = vpop.permute.xlu0 %310
      %v313 = vunpack.c.l.s4 839922192
      %v314 = vunpack.c.0.s8 %v313
      %v315 = vlaneseq
      %v316 = vshrl.u32 %v315, 7
      %v317 = vsub.s32 %v314, %v316
      %v318 = vrot.slane %v311, %v317
      %v320 = vmul.f32 %v307, %v318
      %v321 = vmul.f32 %v308, %v318
      %324 = vrot.lane.b32.xlu0 %v320, 127
      %v325 = vpop.permute.xlu0 %324
      %326 = vrot.lane.b32.xlu0 %v321, 127
      %v327 = vpop.permute.xlu0 %326
      %v328 = vrot.slane %v325, 4
      %v329 = vrot.slane %v327, 4
      %vm330 = vcmask 1043456
      %v331 = vsel %vm330, %v328, %v329
      %vm332 = vcmask 1039360
      %v333 = vsel %vm332, %v325, %v331
      %v336 = vadd.f32 %v305, %v333
      %v337 = vadd.f32 %v306, %v327
      %v338 = vlaneseq
      %v339 = vshrl.u32 %v338, 7
      %v340 = vsub.s32 2, %v339
      %v341 = vrot.slane %v257, %v340
      %v342 = vlaneseq
      %v343 = vshrl.u32 %v342, 7
      %v344 = vsub.s32 6, %v343
      %v345 = vrot.slane %v257, %v344
      %v348 = vlaneseq
      %v349 = vshrl.u32 %v348, 7
      %v350 = vsub.s32 2, %v349
      %v351 = vrot.slane %v341, %v350
      %v352 = vlaneseq
      %v353 = vshrl.u32 %v352, 7
      %v354 = vsub.s32 2, %v353
      %v355 = vrot.slane %v345, %v354
      %v358 = vcombine.low %v351, %v355
      %359 = vrot.lane.b32.xlu0 %v358, 113
      %v360 = vpop.permute.xlu0 %359
      %v361 = vrot.slane %v360, 4
      %vm362 = vcmask 924672
      %v363 = vsel %vm362, %v361, %v360
      %v366 = vmul.f32 %v307, %v363
      %v367 = vmul.f32 %v308, %v361
      %368 = vset.pattern.permute.xlu0 2
      %369 = vperm.xlu0 %368, %v256
      %v370 = vpop.permute.xlu0 %369
      %v372 = vunpack.c.l.s4 839922192
      %v373 = vunpack.c.0.s8 %v372
      %v374 = vlaneseq
      %v375 = vshrl.u32 %v374, 7
      %v376 = vsub.s32 %v373, %v375
      %v377 = vrot.slane %v370, %v376
      %v379 = vmul.f32 %v366, %v377
      %v380 = vmul.f32 %v367, %v377
      %383 = vrot.lane.b32.xlu0 %v379, 126
      %v384 = vpop.permute.xlu0 %383
      %385 = vrot.lane.b32.xlu0 %v380, 126
      %v386 = vpop.permute.xlu0 %385
      %v387 = vrot.slane %v384, 4
      %v388 = vrot.slane %v386, 4
      %v389 = vsel %vm330, %v387, %v388
      %vm390 = vcmask 1031168
      %v391 = vsel %vm390, %v384, %v389
      %v394 = vadd.f32 %v336, %v391
      %v395 = vadd.f32 %v337, %v386
      %v396 = vld [vmem:[#allocation2] sm:$0xff]
      %v397 = vld [vmem:[#allocation2 + $0x8] sm:$0xf]
      %398 = vrot.lane.b32.xlu0 %v281, 127
      %v399 = vpop.permute.xlu0 %398
      %v400 = vrot.slane %v399, 4
      %v401 = vsel %vm332, %v400, %v399
      %v404 = vmul.f32 %v396, %v401
      %v405 = vmul.f32 %v397, %v400
      %406 = vset.pattern.permute.xlu0 3
      %407 = vperm.xlu0 %406, %v256
      %v408 = vpop.permute.xlu0 %407
      %v410 = vunpack.c.l.s4 839922192
      %v411 = vunpack.c.0.s8 %v410
      %v412 = vlaneseq
      %v413 = vshrl.u32 %v412, 7
      %v414 = vsub.s32 %v411, %v413
      %v415 = vrot.slane %v408, %v414
      %v417 = vmul.f32 %v404, %v415
      %v418 = vmul.f32 %v405, %v415
      %421 = vrot.lane.b32.xlu0 %v417, 112
      %v422 = vpop.permute.xlu0 %421
      %423 = vrot.lane.b32.xlu0 %v418, 112
      %v424 = vpop.permute.xlu0 %423
      %v425 = vrot.slane %v422, 4
      %v426 = vrot.slane %v424, 4
      %v427 = vsel %vm330, %v425, %v426
      %vm428 = vcmask 916480
      %v429 = vsel %vm428, %v422, %v427
      %v432 = vadd.f32 %v394, %v429
      %v433 = vadd.f32 %v395, %v424
      %v434 = vld [vmem:[#allocation2 + $0x4] sm:$0xff]
      %435 = vset.pattern.permute.xlu0 4
      %436 = vperm.xlu0 %435, %v256
      %v437 = vpop.permute.xlu0 %436
      %v439 = vunpack.c.l.s4 839922192
      %v440 = vunpack.c.0.s8 %v439
      %v441 = vlaneseq
      %v442 = vshrl.u32 %v441, 7
      %v443 = vsub.s32 %v440, %v442
      %v444 = vrot.slane %v437, %v443
      %v446 = vmul.f32 %v434, %v444
      %448 = vrot.lane.b32.xlu0 %v446, 111
      %v449 = vpop.permute.xlu0 %448
      %v450 = vrot.slane %v449, 4
      %v451 = vsel %vm285, %v450, %v449
      %v454 = vadd.f32 %v432, %v451
      %v455 = vadd.f32 %v433, %v450
      %v456 = vld [vmem:[#allocation2 + $0x4] sm:$0xff]
      %v457 = vld [vmem:[#allocation2 + $0xc] sm:$0xf]
      %458 = vrot.lane.b32.xlu0 %v358, 1
      %v459 = vpop.permute.xlu0 %458
      %v460 = vrot.slane %v459, 4
      %vm461 = vcmask 7168
      %v462 = vsel %vm461, %v460, %v459
      %v465 = vmul.f32 %v456, %v462
      %v466 = vmul.f32 %v457, %v460
      %467 = vset.pattern.permute.xlu0 5
      %468 = vperm.xlu0 %467, %v256
      %v469 = vpop.permute.xlu0 %468
      %v471 = vunpack.c.l.s4 839922192
      %v472 = vunpack.c.0.s8 %v471
      %v473 = vlaneseq
      %v474 = vshrl.u32 %v473, 7
      %v475 = vsub.s32 %v472, %v474
      %v476 = vrot.slane %v469, %v475
      %v478 = vmul.f32 %v465, %v476
      %v479 = vmul.f32 %v466, %v476
      %482 = vrot.lane.b32.xlu0 %v478, 110
      %v483 = vpop.permute.xlu0 %482
      %484 = vrot.lane.b32.xlu0 %v479, 110
      %v485 = vpop.permute.xlu0 %484
      %v486 = vrot.slane %v483, 4
      %vm487 = vcmask 900096
      %v488 = vsel %vm487, %v486, %v483
      %v489 = vsel %vm487, %v486, %v485
      %v492 = vadd.f32 %v454, %v488
      %v493 = vadd.f32 %v455, %v489
      %v494 = vld [vmem:[#allocation2 + $0x4] sm:$0xff]
      %v495 = vld [vmem:[#allocation2 + $0xc] sm:$0xf]
      %496 = vrot.lane.b32.xlu0 %v281, 15
      %v497 = vpop.permute.xlu0 %496
      %v498 = vrot.slane %v497, 4
      %vm499 = vcmask 121856
      %v500 = vsel %vm499, %v498, %v497
      %v503 = vmul.f32 %v494, %v500
      %v504 = vmul.f32 %v495, %v498
      %505 = vset.pattern.permute.xlu0 6
      %506 = vperm.xlu0 %505, %v256
      %v507 = vpop.permute.xlu0 %506
      %v509 = vunpack.c.l.s4 839922192
      %v510 = vunpack.c.0.s8 %v509
      %v511 = vlaneseq
      %v512 = vshrl.u32 %v511, 7
      %v513 = vsub.s32 %v510, %v512
      %v514 = vrot.slane %v507, %v513
      %v516 = vmul.f32 %v503, %v514
      %v517 = vmul.f32 %v504, %v514
      %520 = vrot.lane.b32.xlu0 %v516, 96
      %v521 = vpop.permute.xlu0 %520
      %522 = vrot.lane.b32.xlu0 %v517, 96
      %v523 = vpop.permute.xlu0 %522
      %v524 = vrot.slane %v521, 4
      %vm525 = vcmask 785408
      %v526 = vsel %vm525, %v524, %v521
      %v527 = vsel %vm525, %v524, %v523
      %v530 = vadd.f32 %v492, %v526
      %v531 = vadd.f32 %v493, %v527
      %v532 = vld [vmem:[#allocation2 + $0x4] sm:$0xff]
      %v533 = vld [vmem:[#allocation2 + $0xc] sm:$0xf]
      %534 = vset.pattern.permute.xlu0 7
      %535 = vperm.xlu0 %534, %v256
      %v536 = vpop.permute.xlu0 %535
      %v538 = vunpack.c.l.s4 839922192
      %v539 = vunpack.c.0.s8 %v538
      %v540 = vlaneseq
      %v541 = vshrl.u32 %v540, 7
      %v542 = vsub.s32 %v539, %v541
      %v543 = vrot.slane %v536, %v542
      %v545 = vmul.f32 %v532, %v543
      %v546 = vmul.f32 %v533, %v543
      %549 = vrot.lane.b32.xlu0 %v545, 95
      %v550 = vpop.permute.xlu0 %549
      %551 = vrot.lane.b32.xlu0 %v546, 95
      %v552 = vpop.permute.xlu0 %551
      %v553 = vrot.slane %v550, 4
      %vm554 = vcmask 777216
      %v555 = vsel %vm554, %v553, %v550
      %v556 = vsel %vm554, %v553, %v552
      %v559 = vadd.f32 %v530, %v555
      %v560 = vadd.f32 %v531, %v556
      %561 = vrot.lane.b32.xlu0 %v358, 17
      %v562 = vpop.permute.xlu0 %561
      %v563 = vrot.slane %v562, 4
      %vm564 = vcmask 138240
      %v565 = vsel %vm564, %v563, %v562
      %v568 = vmul.f32 %v532, %v565
      %v569 = vmul.f32 %v533, %v563
      %570 = vset.pattern.permute.xlu0 8
      %571 = vperm.xlu0 %570, %v256
      %v572 = vpop.permute.xlu0 %571
      %v574 = vunpack.c.l.s4 839922192
      %v575 = vunpack.c.0.s8 %v574
      %v576 = vlaneseq
      %v577 = vshrl.u32 %v576, 7
      %v578 = vsub.s32 %v575, %v577
      %v579 = vrot.slane %v572, %v578
      %v581 = vmul.f32 %v568, %v579
      %v582 = vmul.f32 %v569, %v579
      %585 = vrot.lane.b32.xlu0 %v581, 94
      %v586 = vpop.permute.xlu0 %585
      %587 = vrot.lane.b32.xlu0 %v582, 94
      %v588 = vpop.permute.xlu0 %587
      %v589 = vrot.slane %v586, 4
      %vm590 = vcmask 769024
      %v591 = vsel %vm590, %v589, %v586
      %v592 = vsel %vm590, %v589, %v588
      %v595 = vadd.f32 %v559, %v591
      %v596 = vadd.f32 %v560, %v592
      %v597 = vld [vmem:[%s2] sm:$0xf]
      %599 = vset.pattern.permute.xlu0 0
      %600 = vperm.xlu0 %599, %v597
      %v601 = vpop.permute.xlu0 %600
      %v603 = vunpack.c.l.s4 839922192
      %v604 = vunpack.c.0.s8 %v603
      %v605 = vlaneseq
      %v606 = vshrl.u32 %v605, 7
      %v607 = vsub.s32 %v604, %v606
      %v608 = vrot.slane %v601, %v607
      %v610 = vadd.f32 %v595, %v608
      %v611 = vadd.f32 %v596, %v608
      %v612 = vsub.f32 0.0, %v610
      %v613 = vsub.f32 0.0, %v611
      %v614 = vmul.f32 %v612, 1.442695
      %v615 = vpow.pop %v614
      %v616 = vmul.f32 %v613, 1.442695
      %v617 = vpow.pop %v616
      %v618 = vadd.f32 %v615, 1.0
      %v619 = vadd.f32 %v617, 1.0
      %v620 = vrcp.pop %v618
      %v621 = vmul.f32 1.0, %v620
      %v622 = vrcp.pop %v619
      %v623 = vmul.f32 1.0, %v622
      %v624 = vmul.f32 %v610, %v621
      %v625 = vmul.f32 %v611, %v623
      %v626 = vld [vmem:[%s4] sm:$0xff]
      %628 = vset.pattern.permute.xlu0 0
      %629 = vperm.xlu0 %628, %v626
      %v630 = vpop.permute.xlu0 %629
      %v634 = vlaneseq
      %v635 = vshrl.u32 %v634, 7
      %v636 = vsub.s32 0, %v635
      %v637 = vrot.slane %v624, %v636
      %v638 = vlaneseq
      %v639 = vshrl.u32 %v638, 7
      %v640 = vsub.s32 4, %v639
      %v641 = vrot.slane %v624, %v640
      %v642 = vlaneseq
      %v643 = vshrl.u32 %v642, 7
      %v644 = vsub.s32 0, %v643
      %v645 = vrot.slane %v625, %v644
      %v649 = vlaneseq
      %v650 = vshrl.u32 %v649, 7
      %v651 = vsub.s32 0, %v650
      %v652 = vrot.slane %v637, %v651
      %v653 = vlaneseq
      %v654 = vshrl.u32 %v653, 7
      %v655 = vsub.s32 0, %v654
      %v656 = vrot.slane %v641, %v655
      %v657 = vlaneseq
      %v658 = vshrl.u32 %v657, 7
      %v659 = vsub.s32 0, %v658
      %v660 = vrot.slane %v645, %v659
      %v661 = vmul.f32 %v630, %v652
      %v662 = vmul.f32 %v630, %v656
      %v663 = vmul.f32 %v630, %v660
      %v664 = vadd.f32 %v661, 0.0
      %v665 = vadd.f32 %v662, 0.0
      %v666 = vadd.f32 %v663, 0.0
      %667 = vset.pattern.permute.xlu0 1
      %668 = vperm.xlu0 %667, %v626
      %v669 = vpop.permute.xlu0 %668
      %v671 = vlaneseq
      %v672 = vshrl.u32 %v671, 7
      %v673 = vsub.s32 1, %v672
      %v674 = vrot.slane %v624, %v673
      %v675 = vlaneseq
      %v676 = vshrl.u32 %v675, 7
      %v677 = vsub.s32 5, %v676
      %v678 = vrot.slane %v624, %v677
      %v679 = vlaneseq
      %v680 = vshrl.u32 %v679, 7
      %v681 = vsub.s32 1, %v680
      %v682 = vrot.slane %v625, %v681
      %v686 = vlaneseq
      %v687 = vshrl.u32 %v686, 7
      %v688 = vsub.s32 1, %v687
      %v689 = vrot.slane %v674, %v688
      %v690 = vlaneseq
      %v691 = vshrl.u32 %v690, 7
      %v692 = vsub.s32 1, %v691
      %v693 = vrot.slane %v678, %v692
      %v694 = vlaneseq
      %v695 = vshrl.u32 %v694, 7
      %v696 = vsub.s32 1, %v695
      %v697 = vrot.slane %v682, %v696
      %v698 = vmul.f32 %v669, %v689
      %v699 = vmul.f32 %v669, %v693
      %v700 = vmul.f32 %v669, %v697
      %v701 = vadd.f32 %v664, %v698
      %v702 = vadd.f32 %v665, %v699
      %v703 = vadd.f32 %v666, %v700
      %704 = vset.pattern.permute.xlu0 2
      %705 = vperm.xlu0 %704, %v626
      %v706 = vpop.permute.xlu0 %705
      %v708 = vlaneseq
      %v709 = vshrl.u32 %v708, 7
      %v710 = vsub.s32 2, %v709
      %v711 = vrot.slane %v624, %v710
      %v712 = vlaneseq
      %v713 = vshrl.u32 %v712, 7
      %v714 = vsub.s32 6, %v713
      %v715 = vrot.slane %v624, %v714
      %v716 = vlaneseq
      %v717 = vshrl.u32 %v716, 7
      %v718 = vsub.s32 2, %v717
      %v719 = vrot.slane %v625, %v718
      %v723 = vlaneseq
      %v724 = vshrl.u32 %v723, 7
      %v725 = vsub.s32 2, %v724
      %v726 = vrot.slane %v711, %v725
      %v727 = vlaneseq
      %v728 = vshrl.u32 %v727, 7
      %v729 = vsub.s32 2, %v728
      %v730 = vrot.slane %v715, %v729
      %v731 = vlaneseq
      %v732 = vshrl.u32 %v731, 7
      %v733 = vsub.s32 2, %v732
      %v734 = vrot.slane %v719, %v733
      %v735 = vmul.f32 %v706, %v726
      %v736 = vmul.f32 %v706, %v730
      %v737 = vmul.f32 %v706, %v734
      %v738 = vadd.f32 %v701, %v735
      %v739 = vadd.f32 %v702, %v736
      %v740 = vadd.f32 %v703, %v737
      %741 = vset.pattern.permute.xlu0 3
      %742 = vperm.xlu0 %741, %v626
      %v743 = vpop.permute.xlu0 %742
      %v745 = vlaneseq
      %v746 = vshrl.u32 %v745, 7
      %v747 = vsub.s32 3, %v746
      %v748 = vrot.slane %v624, %v747
      %v749 = vlaneseq
      %v750 = vshrl.u32 %v749, 7
      %v751 = vsub.s32 7, %v750
      %v752 = vrot.slane %v624, %v751
      %v753 = vlaneseq
      %v754 = vshrl.u32 %v753, 7
      %v755 = vsub.s32 3, %v754
      %v756 = vrot.slane %v625, %v755
      %v760 = vlaneseq
      %v761 = vshrl.u32 %v760, 7
      %v762 = vsub.s32 3, %v761
      %v763 = vrot.slane %v748, %v762
      %v764 = vlaneseq
      %v765 = vshrl.u32 %v764, 7
      %v766 = vsub.s32 3, %v765
      %v767 = vrot.slane %v752, %v766
      %v768 = vlaneseq
      %v769 = vshrl.u32 %v768, 7
      %v770 = vsub.s32 3, %v769
      %v771 = vrot.slane %v756, %v770
      %v772 = vmul.f32 %v743, %v763
      %v773 = vmul.f32 %v743, %v767
      %v774 = vmul.f32 %v743, %v771
      %v775 = vadd.f32 %v738, %v772
      %v776 = vadd.f32 %v739, %v773
      %v777 = vadd.f32 %v740, %v774
      %v778 = vld [vmem:[%s5] sm:$0xff]
      %780 = vset.pattern.permute.xlu0 0
      %781 = vperm.xlu0 %780, %v778
      %v782 = vpop.permute.xlu0 %781
      %v784 = vadd.f32 %v775, %v782
      %v785 = vadd.f32 %v776, %v782
      %v786 = vadd.f32 %v777, %v782
      %v787 = vsub.f32 0.0, %v784
      %v788 = vsub.f32 0.0, %v785
      %v789 = vsub.f32 0.0, %v786
      %v790 = vmul.f32 %v787, 1.442695
      %v791 = vpow.pop %v790
      %v792 = vmul.f32 %v788, 1.442695
      %v793 = vpow.pop %v792
      %v794 = vmul.f32 %v789, 1.442695
      %v795 = vpow.pop %v794
      %v796 = vadd.f32 %v791, 1.0
      %v797 = vadd.f32 %v793, 1.0
      %v798 = vadd.f32 %v795, 1.0
      %v799 = vrcp.pop %v796
      %v800 = vmul.f32 1.0, %v799
      %v801 = vrcp.pop %v797
      %v802 = vmul.f32 1.0, %v801
      %v803 = vrcp.pop %v798
      %v804 = vmul.f32 1.0, %v803
      %v805 = vmul.f32 %v784, %v800
      %v806 = vmul.f32 %v785, %v802
      %v807 = vmul.f32 %v786, %v804
      %811 = vrot.lane.b32.xlu0 %v805, 17
      %v812 = vpop.permute.xlu0 %811
      %813 = vrot.lane.b32.xlu0 %v806, 17
      %v814 = vpop.permute.xlu0 %813
      %815 = vrot.lane.b32.xlu0 %v807, 17
      %v816 = vpop.permute.xlu0 %815
      %v817 = vsel %vm564, %v812, %v814
      %v818 = vsel %vm564, %v814, %v816
      %821 = vst [vmem:[%s251] sm:$0xff] %v817
      %822 = vst [vmem:[%s251 + $0x8] sm:$0xff] %v818
      %p823 = scmp.lt.s32.totalorder %s17, 1
      %s824 = scalar_select %p823, %s17, 1
      %s825 = smul.addr %s824, 2
      %s826 = smul.addr %s825, 8
      %s827 = scalar_lea.vmem %s6, %s826
      // Predicated region
      $region45: #{dwconv_forward.1} parent=43 // pred_check
        %p828 = pneg %p166
      $region46: #{dwconv_forward.1} parent=43 // pred_check_branch
        %830 = sbr.rel (%p828) target = $region48
      $region47: #{dwconv_forward.1} parent=43 // pred_region
        _
      $region48: #{dwconv_forward.1} parent=43 // pred_fallthru
        _
    $region44: #{dwconv_forward.1} parent=5 // pred_fallthru
      _
    %p831 = scmp.le.s32.totalorder 2, %s12
    // Predicated region
    $region49: #{dwconv_forward.1} parent=5 // pred_check
      %p832 = pneg %p831
    $region50: #{dwconv_forward.1} parent=5 // pred_check_branch
      %834 = sbr.rel (%p832) target = $region52
    $region51: #{dwconv_forward.1} parent=5 // pred_region
      %s835 = ssub.s32 %s12, 2
      // Predicated region
      $region53: #{dwconv_forward.1} parent=51 // pred_check
        %p836 = pneg %p172
      $region54: #{dwconv_forward.1} parent=51 // pred_check_branch
        %838 = sbr.rel (%p836) target = $region56
      $region55: #{dwconv_forward.1} parent=51 // pred_region
        %p839 = scmp.lt.s32.totalorder %s18, 1
        %s840 = scalar_select %p839, %s18, 1
        %s841 = smul.addr %s840, 2
        %s842 = smul.addr %s841, 8
        %s843 = scalar_lea.vmem %s6, %s842
      $region56: #{dwconv_forward.1} parent=51 // pred_fallthru
        _
    $region52: #{dwconv_forward.1} parent=5 // pred_fallthru
      _
  $region6: #{dwconv_forward.1} parent=0 // loop_footer
    %s16 = sadd.s32 1, %s12
  $region7: #{dwconv_forward.1} parent=0 // loop_footer_branch
    %11 = sbr.rel target = $region3
  $region8: #{dwconv_forward.1} parent=0 // loop_exit
    _

</llo_original>
